<compile_context>
chip_gen: v7x
topology: tpu7x:2x2x1
jax: 0.10.0
libtpu: 0.0.40
codegen_flags: <defaults>
</compile_context>

<pallas_src>
import jax
import jax.numpy as jnp
from jax.experimental import pallas as pl
from jax.experimental.pallas import tpu as pltpu


HIDDEN = 24            # logical hidden width (matches nn.Linear(·, 24))
LANE = 128             # TPU lane width; hidden/out cols padded to this for MXU tiles
MAX_TILE_M = 2048      # batch tile (multiple of 8); intermediates stay << scoped VMEM
SPLIT_MIN_BATCH = 64   # below this, one grid step beats splitting (per-step overhead)


def _round_up(v, m):
    return ((v + m - 1) // m) * m


def policy_mlp_kernel(x_ref, w1_ref, b1_ref, w2_ref, b2_ref, w3_ref, b3_ref,
                      o_ref):
    cdt = w1_ref.dtype                         # MXU compute dtype (f32 or bf16)
    x = x_ref[...]                             # [tile_m, in] (pre-cast to cdt)
    # fc1 + ReLU (bias-add / ReLU in f32 on the VPU, f32 accumulation on MXU)
    h1 = jnp.dot(x, w1_ref[...], preferred_element_type=jnp.float32)
    h1 = jnp.maximum(h1 + b1_ref[...], 0.0)    # [tile_m, 128]
    # fc2 + ReLU
    h2 = jnp.dot(h1.astype(cdt), w2_ref[...], preferred_element_type=jnp.float32)
    h2 = jnp.maximum(h2 + b2_ref[...], 0.0)    # [tile_m, 128]
    # fc3 (no activation); padded columns are exactly zero -> slice to the
    # logical action dim and store the narrow block (no padded writeback).
    out = jnp.dot(h2.astype(cdt), w3_ref[...], preferred_element_type=jnp.float32)
    out = out + b3_ref[...]                    # [tile_m, 128]
    o_ref[...] = out[:, : o_ref.shape[1]].astype(o_ref.dtype)   # [tile_m, out_dim]


def policy_forward(x, padded_params, out_dim):
    """x: [B, in_features]; padded_params: lane-padded weights/biases."""
    w1, b1, w2, b2, w3, b3 = (padded_params[k]
                              for k in ("w1", "b1", "w2", "b2", "w3", "b3"))
    batch, in_dim = x.shape

    # Pre-cast activations once in the wrapper (no-op on the f32 path).
    x = x.astype(w1.dtype)

    # Batch tiling:
    #  * small batches: single block (block dim == full dim is always legal),
    #  * batch >= 64: >= 2 grid steps so both v7x TensorCores are used,
    #    capped at MAX_TILE_M rows (multiple of 8) for very large batches.
    if batch < SPLIT_MIN_BATCH:
        tile_m = batch
    else:
        tile_m = min(MAX_TILE_M, _round_up(pl.cdiv(batch, 2), 8))
    grid = (pl.cdiv(batch, tile_m),)

    def resident(shape):
        # Constant block index -> stays VMEM-resident; single-buffer it.
        return pl.BlockSpec(shape, lambda i: (0, 0),
                            pipeline_mode=pl.Buffered(1))

    # Cost hint with the padded dims actually executed.
    flops = 2 * batch * (in_dim * LANE + LANE * LANE + LANE * LANE)
    bytes_accessed = (
        x.size * x.dtype.itemsize
        + sum(int(p.size) * p.dtype.itemsize for p in (w1, b1, w2, b2, w3, b3))
        + batch * out_dim * 4)

    return pl.pallas_call(
        policy_mlp_kernel,
        out_shape=jax.ShapeDtypeStruct((batch, out_dim), jnp.float32),
        grid=grid,
        in_specs=[
            pl.BlockSpec((tile_m, in_dim), lambda i: (i, 0)),   # x: tiled on batch
            resident(w1.shape), resident(b1.shape),
            resident(w2.shape), resident(b2.shape),
            resident(w3.shape), resident(b3.shape),
        ],
        out_specs=pl.BlockSpec((tile_m, out_dim), lambda i: (i, 0)),
        compiler_params=pltpu.CompilerParams(
            # v7x: shard batch tiles across both TensorCores; no-op on v5e/v6e.
            dimension_semantics=("parallel",)),
        cost_estimate=pl.CostEstimate(
            flops=flops, bytes_accessed=bytes_accessed, transcendentals=0),
    )(x, w1, b1, w2, b2, w3, b3)


def init_params(key, in_dim, out_dim):
    """Deterministic init mimicking nn.Linear's U(-1/sqrt(fan_in), 1/sqrt(fan_in))."""
    ks = jax.random.split(key, 6)

    def linear(kw, kb, fan_in, fan_out):
        bound = 1.0 / jnp.sqrt(jnp.float32(fan_in))
        w = jax.random.uniform(kw, (fan_in, fan_out), jnp.float32, -bound, bound)
        b = jax.random.uniform(kb, (1, fan_out), jnp.float32, -bound, bound)
        return w, b

    w1, b1 = linear(ks[0], ks[1], in_dim, HIDDEN)
    w2, b2 = linear(ks[2], ks[3], HIDDEN, HIDDEN)
    w3, b3 = linear(ks[4], ks[5], HIDDEN, out_dim)
    return dict(w1=w1, b1=b1, w2=w2, b2=b2, w3=w3, b3=b3)


def pad_params(params, weight_dtype=jnp.float32):
    """One-time zero-pad of hidden/output cols to 128 lanes; weights optionally bf16.

    Zero padding is exact: extra weight rows/cols and bias entries are 0 and
    ReLU(0) = 0, so padded lanes never contaminate the logical outputs (which
    the kernel slices out before storing).  Biases stay f32 (bias-add / ReLU
    run on the VPU in f32).  Use weight_dtype=f32 on v5e (no bf16 VPU there);
    bf16 weights are MXU-native on v6e/v7x.
    """
    def pad2(a, rows, cols, dtype):
        r, c = a.shape
        return jnp.pad(a, ((0, rows - r), (0, cols - c))).astype(dtype)

    in_dim = params["w1"].shape[0]
    return dict(
        w1=pad2(params["w1"], in_dim, LANE, weight_dtype),
        b1=pad2(params["b1"], 1, LANE, jnp.float32),
        w2=pad2(params["w2"], LANE, LANE, weight_dtype),
        b2=pad2(params["b2"], 1, LANE, jnp.float32),
        w3=pad2(params["w3"], LANE, LANE, weight_dtype),
        b3=pad2(params["b3"], 1, LANE, jnp.float32),
    )


def policy_forward_ref(x, p):
    h1 = jnp.maximum(x @ p["w1"] + p["b1"], 0.0)
    h2 = jnp.maximum(h1 @ p["w2"] + p["b2"], 0.0)
    return h2 @ p["w3"] + p["b3"]


if __name__ == "__main__":
    key = jax.random.PRNGKey(0)
    k_params, k_x, k_x2 = jax.random.split(key, 3)

    # Small env-like shapes: observation dim 4 (e.g. CartPole), 2 actions.
    batch, in_dim, out_dim = 2, 4, 2

    params = init_params(k_params, in_dim, out_dim)
    x = jax.random.normal(k_x, (batch, in_dim), jnp.float32)
    ref = policy_forward_ref(x, params)

    # f32 weights (exact path, recommended on v5e) — tight tolerance.
    p_f32 = pad_params(params, jnp.float32)
    out = jax.block_until_ready(policy_forward(x, p_f32, out_dim))
    assert out.shape == (batch, out_dim)
    assert jnp.allclose(out, ref, atol=1e-5, rtol=1e-5)

    # bf16 weights + pre-cast activations, f32 accumulation (v6e/v7x) — looser tol.
    p_bf16 = pad_params(params, jnp.bfloat16)
    out_bf = jax.block_until_ready(policy_forward(x, p_bf16, out_dim))
    assert out_bf.shape == (batch, out_dim)
    assert jnp.allclose(out_bf, ref, atol=2e-2, rtol=2e-2)

    # Larger batch exercising the multi-step grid (>=2 parallel tiles, ragged
    # last tile discarded on writeback).
    big_batch = 300
    xb = jax.random.normal(k_x2, (big_batch, in_dim), jnp.float32)
    ref_b = policy_forward_ref(xb, params)
    out_b = jax.block_until_ready(policy_forward(xb, p_f32, out_dim))
    assert out_b.shape == (big_batch, out_dim)
    assert jnp.allclose(out_b, ref_b, atol=1e-5, rtol=1e-5)

    # TODO(synk): backprop()/Adam optimizer step is training-side state and is
    # not part of the forward kernel.
    print("KERNEL_OK")
</pallas_src>

<mosaic_0001>
module attributes {stable_mosaic.version = 11 : i64} {
  func.func @policy_mlp_kernel(%arg0: i32, %arg1: memref<2x4xf32, #tpu.memory_space<vmem>>, %arg2: memref<4x128xf32, #tpu.memory_space<vmem>>, %arg3: memref<1x128xf32, #tpu.memory_space<vmem>>, %arg4: memref<128x128xf32, #tpu.memory_space<vmem>>, %arg5: memref<1x128xf32, #tpu.memory_space<vmem>>, %arg6: memref<128x128xf32, #tpu.memory_space<vmem>>, %arg7: memref<1x128xf32, #tpu.memory_space<vmem>>, %arg8: memref<2x2xf32, #tpu.memory_space<vmem>>) attributes {dimension_semantics = [#tpu.dimension_semantics<parallel>], iteration_bounds = array<i64: 1>, scalar_prefetch = 0 : i64, scratch_operands = 0 : i64, tpu.core_type = #tpu.core_type<tc>, window_params = [{transform_indices = @transform_0, window_bounds = array<i64: 2, 4>}, {pipeline_mode = #tpu.pipeline_mode<synchronous>, transform_indices = @transform_1, window_bounds = array<i64: 4, 128>}, {pipeline_mode = #tpu.pipeline_mode<synchronous>, transform_indices = @transform_2, window_bounds = array<i64: 1, 128>}, {pipeline_mode = #tpu.pipeline_mode<synchronous>, transform_indices = @transform_3, window_bounds = array<i64: 128, 128>}, {pipeline_mode = #tpu.pipeline_mode<synchronous>, transform_indices = @transform_4, window_bounds = array<i64: 1, 128>}, {pipeline_mode = #tpu.pipeline_mode<synchronous>, transform_indices = @transform_5, window_bounds = array<i64: 128, 128>}, {pipeline_mode = #tpu.pipeline_mode<synchronous>, transform_indices = @transform_6, window_bounds = array<i64: 1, 128>}, {transform_indices = @transform_7, window_bounds = array<i64: 2, 2>}]} {
    %c0 = arith.constant 0 : index
    %c0_0 = arith.constant 0 : index
    %0 = vector.load %arg1[%c0, %c0_0] : memref<2x4xf32, #tpu.memory_space<vmem>>, vector<2x4xf32>
    %c0_1 = arith.constant 0 : index
    %c0_2 = arith.constant 0 : index
    %1 = vector.load %arg2[%c0_1, %c0_2] : memref<4x128xf32, #tpu.memory_space<vmem>>, vector<4x128xf32>
    %cst = arith.constant dense<0.000000e+00> : vector<2x128xf32>
    %2 = tpu.matmul %0, %1, %cst {dimension_numbers = #tpu.dot_dimension_numbers<[1], [0], [0], [1], [0, 0, 1, 1], [], []>} : vector<2x4xf32>, vector<4x128xf32>, vector<2x128xf32> -> vector<2x128xf32>
    %c0_3 = arith.constant 0 : index
    %c0_4 = arith.constant 0 : index
    %3 = vector.load %arg3[%c0_3, %c0_4] : memref<1x128xf32, #tpu.memory_space<vmem>>, vector<1x128xf32>
    %4 = vector.broadcast %3 : vector<1x128xf32> to vector<2x128xf32>
    %5 = arith.addf %2, %4 : vector<2x128xf32>
    %cst_5 = arith.constant 0.000000e+00 : f32
    %6 = vector.broadcast %cst_5 : f32 to vector<2x128xf32>
    %7 = arith.maximumf %5, %6 : vector<2x128xf32>
    %c0_6 = arith.constant 0 : index
    %c0_7 = arith.constant 0 : index
    %8 = vector.load %arg4[%c0_6, %c0_7] : memref<128x128xf32, #tpu.memory_space<vmem>>, vector<128x128xf32>
    %cst_8 = arith.constant dense<0.000000e+00> : vector<2x128xf32>
    %9 = tpu.matmul %7, %8, %cst_8 {dimension_numbers = #tpu.dot_dimension_numbers<[1], [0], [0], [1], [0, 0, 1, 1], [], []>} : vector<2x128xf32>, vector<128x128xf32>, vector<2x128xf32> -> vector<2x128xf32>
    %c0_9 = arith.constant 0 : index
    %c0_10 = arith.constant 0 : index
    %10 = vector.load %arg5[%c0_9, %c0_10] : memref<1x128xf32, #tpu.memory_space<vmem>>, vector<1x128xf32>
    %11 = vector.broadcast %10 : vector<1x128xf32> to vector<2x128xf32>
    %12 = arith.addf %9, %11 : vector<2x128xf32>
    %cst_11 = arith.constant 0.000000e+00 : f32
    %13 = vector.broadcast %cst_11 : f32 to vector<2x128xf32>
    %14 = arith.maximumf %12, %13 : vector<2x128xf32>
    %c0_12 = arith.constant 0 : index
    %c0_13 = arith.constant 0 : index
    %15 = vector.load %arg6[%c0_12, %c0_13] : memref<128x128xf32, #tpu.memory_space<vmem>>, vector<128x128xf32>
    %cst_14 = arith.constant dense<0.000000e+00> : vector<2x128xf32>
    %16 = tpu.matmul %14, %15, %cst_14 {dimension_numbers = #tpu.dot_dimension_numbers<[1], [0], [0], [1], [0, 0, 1, 1], [], []>} : vector<2x128xf32>, vector<128x128xf32>, vector<2x128xf32> -> vector<2x128xf32>
    %c0_15 = arith.constant 0 : index
    %c0_16 = arith.constant 0 : index
    %17 = vector.load %arg7[%c0_15, %c0_16] : memref<1x128xf32, #tpu.memory_space<vmem>>, vector<1x128xf32>
    %18 = vector.broadcast %17 : vector<1x128xf32> to vector<2x128xf32>
    %19 = arith.addf %16, %18 : vector<2x128xf32>
    %20 = vector.extract_strided_slice %19 {offsets = [0, 0], sizes = [2, 2], strides = [1, 1]} : vector<2x128xf32> to vector<2x2xf32>
    %c0_17 = arith.constant 0 : index
    %c0_18 = arith.constant 0 : index
    %21 = vector.load %arg8[%c0_17, %c0_18] : memref<2x2xf32, #tpu.memory_space<vmem>>, vector<2x2xf32>
    tpu.vector_store %arg8[%c0_17, %c0_18], %20 {strides = array<i32>} : memref<2x2xf32, #tpu.memory_space<vmem>>, vector<2x2xf32>,
    return
  }
  func.func @transform_0(%arg0: i32) -> (i32, i32) {
    %c0_i32 = arith.constant 0 : i32
    %c0_i32_0 = arith.constant 0 : i32
    return %arg0, %c0_i32 : i32, i32
  }
  func.func @transform_1(%arg0: i32) -> (i32, i32) {
    %c0_i32 = arith.constant 0 : i32
    %c0_i32_0 = arith.constant 0 : i32
    %c0_i32_1 = arith.constant 0 : i32
    return %c0_i32, %c0_i32_0 : i32, i32
  }
  func.func @transform_2(%arg0: i32) -> (i32, i32) {
    %c0_i32 = arith.constant 0 : i32
    %c0_i32_0 = arith.constant 0 : i32
    %c0_i32_1 = arith.constant 0 : i32
    return %c0_i32, %c0_i32_0 : i32, i32
  }
  func.func @transform_3(%arg0: i32) -> (i32, i32) {
    %c0_i32 = arith.constant 0 : i32
    %c0_i32_0 = arith.constant 0 : i32
    %c0_i32_1 = arith.constant 0 : i32
    return %c0_i32, %c0_i32_0 : i32, i32
  }
  func.func @transform_4(%arg0: i32) -> (i32, i32) {
    %c0_i32 = arith.constant 0 : i32
    %c0_i32_0 = arith.constant 0 : i32
    %c0_i32_1 = arith.constant 0 : i32
    return %c0_i32, %c0_i32_0 : i32, i32
  }
  func.func @transform_5(%arg0: i32) -> (i32, i32) {
    %c0_i32 = arith.constant 0 : i32
    %c0_i32_0 = arith.constant 0 : i32
    %c0_i32_1 = arith.constant 0 : i32
    return %c0_i32, %c0_i32_0 : i32, i32
  }
  func.func @transform_6(%arg0: i32) -> (i32, i32) {
    %c0_i32 = arith.constant 0 : i32
    %c0_i32_0 = arith.constant 0 : i32
    %c0_i32_1 = arith.constant 0 : i32
    return %c0_i32, %c0_i32_0 : i32, i32
  }
  func.func @transform_7(%arg0: i32) -> (i32, i32) {
    %c0_i32 = arith.constant 0 : i32
    %c0_i32_0 = arith.constant 0 : i32
    return %arg0, %c0_i32 : i32, i32
  }
}

</mosaic_0001>

<llo_original>
// kernel: tpu_custom_call.1
$region0: #{tpu_custom_call.1}
  #allocation0 [shape = 'u32[]', space=smem, size = 0x4, offset = 0x4, fixed_abs, tag = 'smem constant byte address 0x4 - core index']
  #allocation1 [shape = 'u32[144,128]{1,0:T(1,128)}', space=vmem, size = 0x12000, scoped, tag = 'internal scratch']
  %s0 = inlined_call_operand.hbm [shape: f32[2,4], index: 0, kind: input, shape index: {}]
  %s1 = inlined_call_operand.hbm [shape: f32[4,128], index: 1, kind: input, shape index: {}]
  %s2 = inlined_call_operand.vmem [shape: f32[1,128], index: 2, kind: input, shape index: {}]
  %s3 = inlined_call_operand.hbm [shape: f32[128,128], index: 3, kind: input, shape index: {}]
  %s4 = inlined_call_operand.vmem [shape: f32[1,128], index: 4, kind: input, shape index: {}]
  %s5 = inlined_call_operand.hbm [shape: f32[128,128], index: 5, kind: input, shape index: {}]
  %s6 = inlined_call_operand.vmem [shape: f32[1,128], index: 6, kind: input, shape index: {}]
  %s7 = inlined_call_operand.hbm [shape: f32[2,2], index: 7, kind: output, shape index: {}]
  %s8 = sld [smem:[#allocation0]]
  $region54: #{tpu_custom_call.1} parent=0
    _
  %s10 = ssub.s32 1, %s8
  %s11 = scalar_select 0, %s10, %s8
  $region1: #{tpu_custom_call.1} parent=0
    #allocation2 [shape = 'u8[1024]{0}', space=vmem, size = 0x400, scoped, tag = 'input window, operand 0, single buffered']
    #allocation3 [shape = 's32[1]{0}', space=sflag, size = 0x4, scoped, tag = 'scoped memory for tpu_custom_call.1']
    #allocation4 [shape = 's32[1]{0}', space=sflag, size = 0x4, scoped, tag = 'scoped memory for tpu_custom_call.1']
    #allocation5 [shape = 'u8[2048]{0}', space=vmem, size = 0x800, scoped, tag = 'input window, operand 1, single buffered']
    #allocation6 [shape = 's32[1]{0}', space=sflag, size = 0x4, scoped, tag = 'scoped memory for tpu_custom_call.1']
    #allocation7 [shape = 'u8[65536]{0}', space=vmem, size = 0x10000, scoped, tag = 'input window, operand 3, single buffered']
    #allocation8 [shape = 'u8[65536]{0}', space=vmem, size = 0x10000, scoped, tag = 'input window, operand 5, single buffered']
    #allocation9 [shape = 's32[1]{0}', space=sflag, size = 0x4, scoped, tag = 'scoped memory for tpu_custom_call.1']
    #allocation10 [shape = 'u8[1024]{0}', space=vmem, size = 0x400, scoped, tag = 'output window, operand 0, single buffered']
    %12 = vsyncpa [#allocation3], 0
    %13 = vsyncpa [#allocation6], 0
    %14 = vsyncpa [#allocation9], 0
    %15 = vsyncpa [#allocation4], 0
    // Predicated region
    $region2: #{tpu_custom_call.1} parent=1 // pred_check
      _
    $region3: #{tpu_custom_call.1} parent=1 // pred_check_branch
      %17 = sbr.rel (0) target = $region5
    $region4: #{tpu_custom_call.1} parent=1 // pred_region
      %s19 = ssub.s32 32, 32
      %20 = vsyncadd [#allocation3], %s19
      %s22 = sshll.u32 [#allocation2], 4
      %s23 = int_to_ptr.vmem [resolvable:$true] %s22
      %25 = dma.hbm_to_vmem [thread:$0]  %s0, 32, %s23, [#allocation3]
    $region5: #{tpu_custom_call.1} parent=1 // pred_fallthru
      _
    // Predicated region
    $region6: #{tpu_custom_call.1} parent=1 // pred_check
      _
    $region7: #{tpu_custom_call.1} parent=1 // pred_check_branch
      %27 = sbr.rel (0) target = $region9
    $region8: #{tpu_custom_call.1} parent=1 // pred_region
      %s29 = ssub.s32 64, 64
      %30 = vsyncadd [#allocation6], %s29
      %s32 = sshll.u32 [#allocation5], 4
      %s33 = int_to_ptr.vmem [resolvable:$true] %s32
      %35 = dma.hbm_to_vmem [thread:$0]  %s1, 64, %s33, [#allocation6]
    $region9: #{tpu_custom_call.1} parent=1 // pred_fallthru
      _
    // Predicated region
    $region10: #{tpu_custom_call.1} parent=1 // pred_check
      _
    $region11: #{tpu_custom_call.1} parent=1 // pred_check_branch
      %37 = sbr.rel (0) target = $region13
    $region12: #{tpu_custom_call.1} parent=1 // pred_region
      _
    $region13: #{tpu_custom_call.1} parent=1 // pred_fallthru
      _
    // Predicated region
    $region14: #{tpu_custom_call.1} parent=1 // pred_check
      _
    $region15: #{tpu_custom_call.1} parent=1 // pred_check_branch
      %39 = sbr.rel (0) target = $region17
    $region16: #{tpu_custom_call.1} parent=1 // pred_region
      %s41 = ssub.s32 2048, 2048
      %42 = vsyncadd [#allocation6], %s41
      %s43 = sshll.u32 [#allocation7], 4
      %s44 = int_to_ptr.vmem [resolvable:$true] %s43
      %49 = dma.hbm_to_vmem [thread:$0]  %s3, 2048, %s44, [#allocation6], 128, 128, 8
    $region17: #{tpu_custom_call.1} parent=1 // pred_fallthru
      _
    // Predicated region
    $region18: #{tpu_custom_call.1} parent=1 // pred_check
      _
    $region19: #{tpu_custom_call.1} parent=1 // pred_check_branch
      %51 = sbr.rel (0) target = $region21
    $region20: #{tpu_custom_call.1} parent=1 // pred_region
      _
    $region21: #{tpu_custom_call.1} parent=1 // pred_fallthru
      _
    // Predicated region
    $region22: #{tpu_custom_call.1} parent=1 // pred_check
      _
    $region23: #{tpu_custom_call.1} parent=1 // pred_check_branch
      %53 = sbr.rel (0) target = $region25
    $region24: #{tpu_custom_call.1} parent=1 // pred_region
      %s55 = ssub.s32 2048, 2048
      %56 = vsyncadd [#allocation9], %s55
      %s57 = sshll.u32 [#allocation8], 4
      %s58 = int_to_ptr.vmem [resolvable:$true] %s57
      %63 = dma.hbm_to_vmem [thread:$0]  %s5, 2048, %s58, [#allocation9], 128, 128, 8
    $region25: #{tpu_custom_call.1} parent=1 // pred_fallthru
      _
    // Predicated region
    $region26: #{tpu_custom_call.1} parent=1 // pred_check
      _
    $region27: #{tpu_custom_call.1} parent=1 // pred_check_branch
      %65 = sbr.rel (0) target = $region29
    $region28: #{tpu_custom_call.1} parent=1 // pred_region
      _
    $region29: #{tpu_custom_call.1} parent=1 // pred_fallthru
      _
    // Predicated region
    $region30: #{tpu_custom_call.1} parent=1 // pred_check
      _
    $region31: #{tpu_custom_call.1} parent=1 // pred_check_branch
      %67 = sbr.rel (0) target = $region33
    $region32: #{tpu_custom_call.1} parent=1 // pred_region
      %68 = dma.done [#allocation3], 32
    $region33: #{tpu_custom_call.1} parent=1 // pred_fallthru
      _
    // Predicated region
    $region34: #{tpu_custom_call.1} parent=1 // pred_check
      _
    $region35: #{tpu_custom_call.1} parent=1 // pred_check_branch
      %70 = sbr.rel (0) target = $region37
    $region36: #{tpu_custom_call.1} parent=1 // pred_region
      %71 = dma.done [#allocation6], 64
    $region37: #{tpu_custom_call.1} parent=1 // pred_fallthru
      _
    // Predicated region
    $region38: #{tpu_custom_call.1} parent=1 // pred_check
      _
    $region39: #{tpu_custom_call.1} parent=1 // pred_check_branch
      %73 = sbr.rel (0) target = $region41
    $region40: #{tpu_custom_call.1} parent=1 // pred_region
      %74 = dma.done [#allocation6], 2048
    $region41: #{tpu_custom_call.1} parent=1 // pred_fallthru
      _
    // Predicated region
    $region42: #{tpu_custom_call.1} parent=1 // pred_check
      _
    $region43: #{tpu_custom_call.1} parent=1 // pred_check_branch
      %76 = sbr.rel (0) target = $region45
    $region44: #{tpu_custom_call.1} parent=1 // pred_region
      %77 = dma.done [#allocation9], 2048
    $region45: #{tpu_custom_call.1} parent=1 // pred_fallthru
      _
    %v78 = vld [vmem:[#allocation2] sm:$0x3]
    %v79 = vld [vmem:[#allocation5] sm:$0xf]
    %v80 = vld [vmem:[%s2] sm:$0x1]
    %v82 = vlaneseq
    %v83 = vshrl.u32 %v82, 7
    %v84 = vsub.s32 0, %v83
    %v85 = vrot.slane %v80, %v84
    %vm87 = vcmask 31744
    %v89 = vsel %vm87, %v78, 0
    %vm91 = vcmask 1043456
    %v93 = vsel %vm91, %v79, 0
    %95 = vmatprep.subr.mxu0 0.0
    %96 = vmatpush1.msra.mxu0 %v93
    %97 = vmatprep.subr.mxu0 0.0
    %98 = vmatpush1.msra.mxu0 0.0
    %99 = vmatprep.subr.mxu0 0.0
    %100 = vmatpush1.msra.mxu0 0.0
    %101 = vmatprep.subr.mxu0 0.0
    %102 = vmatpush1.msra.mxu0 0.0
    %103 = vmatprep.subr.mxu0 0.0
    %104 = vmatpush1.msra.mxu0 0.0
    %105 = vmatprep.subr.mxu0 0.0
    %106 = vmatpush1.msra.mxu0 0.0
    %107 = vmatprep.subr.mxu0 0.0
    %108 = vmatpush1.msra.mxu0 0.0
    %109 = vmatprep.subr.mxu0 0.0
    %110 = vmatpush1.msra.mxu0 0.0
    %111 = vmatprep.subr.mxu0 0.0
    %112 = vmatpush1.msra.mxu0 0.0
    %113 = vmatprep.subr.mxu0 0.0
    %114 = vmatpush1.msra.mxu0 0.0
    %115 = vmatprep.subr.mxu0 0.0
    %116 = vmatpush1.msra.mxu0 0.0
    %117 = vmatprep.subr.mxu0 0.0
    %118 = vmatpush1.msra.mxu0 0.0
    %119 = vmatprep.subr.mxu0 0.0
    %120 = vmatpush1.msra.mxu0 0.0
    %121 = vmatprep.subr.mxu0 0.0
    %122 = vmatpush1.msra.mxu0 0.0
    %123 = vmatprep.subr.mxu0 0.0
    %124 = vmatpush1.msra.mxu0 0.0
    %125 = vmatprep.subr.mxu0 0.0
    %126 = vmatpush1.msra.mxu0 0.0
    %127 = vmatprep.subr.mxu0 0.0
    %128 = vmatpush1.msra.mxu0 0.0
    %129 = vmatprep.subr.mxu0 0.0
    %130 = vmatpush1.msra.mxu0 0.0
    %131 = vmatprep.subr.mxu0 0.0
    %132 = vmatpush1.msra.mxu0 0.0
    %133 = vmatprep.subr.mxu0 0.0
    %134 = vmatpush1.msra.mxu0 0.0
    %135 = vmatprep.subr.mxu0 0.0
    %136 = vmatpush1.msra.mxu0 0.0
    %137 = vmatprep.subr.mxu0 0.0
    %138 = vmatpush1.msra.mxu0 0.0
    %139 = vmatprep.subr.mxu0 0.0
    %140 = vmatpush1.msra.mxu0 0.0
    %141 = vmatprep.subr.mxu0 0.0
    %142 = vmatpush1.msra.mxu0 0.0
    %143 = vmatprep.subr.mxu0 0.0
    %144 = vmatpush1.msra.mxu0 0.0
    %145 = vmatprep.subr.mxu0 0.0
    %146 = vmatpush1.msra.mxu0 0.0
    %147 = vmatprep.subr.mxu0 0.0
    %148 = vmatpush1.msra.mxu0 0.0
    %149 = vmatprep.subr.mxu0 0.0
    %150 = vmatpush1.msra.mxu0 0.0
    %151 = vmatprep.subr.mxu0 0.0
    %152 = vmatpush1.msra.mxu0 0.0
    %153 = vmatprep.subr.mxu0 0.0
    %154 = vmatpush1.msra.mxu0 0.0
    %155 = vmatprep.subr.mxu0 0.0
    %156 = vmatpush1.msra.mxu0 0.0
    %157 = vmatprep.subr.mxu0 0.0
    %158 = vmatpush1.msra.mxu0 0.0
    %159 = vmatprep.mubr.f32.mxu0 0.0
    %160 = vmatmul.mubr.f32.gmra.mrb[0].mxu0 %v89
    %v161 = vpop.f32.mrb[0].mxu0
    %v162 = vadd.f32 %v85, %v161
    %v163 = vpop.f32.mrb[0].mxu0
    %164 = vdwg.mxu0
    %v165 = vmax.f32 %v162, 0.0
    %v166 = vld [vmem:[#allocation7] sm:$0xff]
    %v167 = vld [vmem:[#allocation7 + $0x8] sm:$0xff]
    %v168 = vld [vmem:[#allocation7 + $0x10] sm:$0xff]
    %v169 = vld [vmem:[#allocation7 + $0x18] sm:$0xff]
    %v170 = vld [vmem:[#allocation7 + $0x20] sm:$0xff]
    %v171 = vld [vmem:[#allocation7 + $0x28] sm:$0xff]
    %v172 = vld [vmem:[#allocation7 + $0x30] sm:$0xff]
    %v173 = vld [vmem:[#allocation7 + $0x38] sm:$0xff]
    %v174 = vld [vmem:[#allocation7 + $0x40] sm:$0xff]
    %v175 = vld [vmem:[#allocation7 + $0x48] sm:$0xff]
    %v176 = vld [vmem:[#allocation7 + $0x50] sm:$0xff]
    %v177 = vld [vmem:[#allocation7 + $0x58] sm:$0xff]
    %v178 = vld [vmem:[#allocation7 + $0x60] sm:$0xff]
    %v179 = vld [vmem:[#allocation7 + $0x68] sm:$0xff]
    %v180 = vld [vmem:[#allocation7 + $0x70] sm:$0xff]
    %v181 = vld [vmem:[#allocation7 + $0x78] sm:$0xff]
    %v182 = vld [vmem:[%s4] sm:$0x1]
    %v184 = vlaneseq
    %v185 = vshrl.u32 %v184, 7
    %v186 = vsub.s32 0, %v185
    %v187 = vrot.slane %v182, %v186
    %189 = vmatprep.subr.mxu0 0.0
    %190 = vmatpush1.msra.mxu0 %v166
    %191 = vmatprep.subr.mxu0 0.0
    %192 = vmatpush1.msra.mxu0 %v167
    %193 = vmatprep.subr.mxu0 0.0
    %194 = vmatpush1.msra.mxu0 %v168
    %195 = vmatprep.subr.mxu0 0.0
    %196 = vmatpush1.msra.mxu0 %v169
    %197 = vmatprep.subr.mxu0 0.0
    %198 = vmatpush1.msra.mxu0 %v170
    %199 = vmatprep.subr.mxu0 0.0
    %200 = vmatpush1.msra.mxu0 %v171
    %201 = vmatprep.subr.mxu0 0.0
    %202 = vmatpush1.msra.mxu0 %v172
    %203 = vmatprep.subr.mxu0 0.0
    %204 = vmatpush1.msra.mxu0 %v173
    %205 = vmatprep.subr.mxu0 0.0
    %206 = vmatpush1.msra.mxu0 %v174
    %207 = vmatprep.subr.mxu0 0.0
    %208 = vmatpush1.msra.mxu0 %v175
    %209 = vmatprep.subr.mxu0 0.0
    %210 = vmatpush1.msra.mxu0 %v176
    %211 = vmatprep.subr.mxu0 0.0
    %212 = vmatpush1.msra.mxu0 %v177
    %213 = vmatprep.subr.mxu0 0.0
    %214 = vmatpush1.msra.mxu0 %v178
    %215 = vmatprep.subr.mxu0 0.0
    %216 = vmatpush1.msra.mxu0 %v179
    %217 = vmatprep.subr.mxu0 0.0
    %218 = vmatpush1.msra.mxu0 %v180
    %219 = vmatprep.subr.mxu0 0.0
    %220 = vmatpush1.msra.mxu0 %v181
    %221 = vmatprep.subr.mxu0 0.0
    %222 = vmatpush1.msra.mxu0 0.0
    %223 = vmatprep.subr.mxu0 0.0
    %224 = vmatpush1.msra.mxu0 0.0
    %225 = vmatprep.subr.mxu0 0.0
    %226 = vmatpush1.msra.mxu0 0.0
    %227 = vmatprep.subr.mxu0 0.0
    %228 = vmatpush1.msra.mxu0 0.0
    %229 = vmatprep.subr.mxu0 0.0
    %230 = vmatpush1.msra.mxu0 0.0
    %231 = vmatprep.subr.mxu0 0.0
    %232 = vmatpush1.msra.mxu0 0.0
    %233 = vmatprep.subr.mxu0 0.0
    %234 = vmatpush1.msra.mxu0 0.0
    %235 = vmatprep.subr.mxu0 0.0
    %236 = vmatpush1.msra.mxu0 0.0
    %237 = vmatprep.subr.mxu0 0.0
    %238 = vmatpush1.msra.mxu0 0.0
    %239 = vmatprep.subr.mxu0 0.0
    %240 = vmatpush1.msra.mxu0 0.0
    %241 = vmatprep.subr.mxu0 0.0
    %242 = vmatpush1.msra.mxu0 0.0
    %243 = vmatprep.subr.mxu0 0.0
    %244 = vmatpush1.msra.mxu0 0.0
    %245 = vmatprep.subr.mxu0 0.0
    %246 = vmatpush1.msra.mxu0 0.0
    %247 = vmatprep.subr.mxu0 0.0
    %248 = vmatpush1.msra.mxu0 0.0
    %249 = vmatprep.subr.mxu0 0.0
    %250 = vmatpush1.msra.mxu0 0.0
    %251 = vmatprep.subr.mxu0 0.0
    %252 = vmatpush1.msra.mxu0 0.0
    %253 = vmatprep.mubr.f32.mxu0 0.0
    %254 = vmatmul.mubr.f32.gmra.mrb[0].mxu0 %v165
    %v255 = vpop.f32.mrb[0].mxu0
    %v256 = vadd.f32 %v187, %v255
    %v257 = vpop.f32.mrb[0].mxu0
    %258 = vdwg.mxu0
    %v259 = vmax.f32 %v256, 0.0
    %v260 = vld [vmem:[#allocation8] sm:$0xff]
    %v261 = vld [vmem:[#allocation8 + $0x8] sm:$0xff]
    %v262 = vld [vmem:[#allocation8 + $0x10] sm:$0xff]
    %v263 = vld [vmem:[#allocation8 + $0x18] sm:$0xff]
    %v264 = vld [vmem:[#allocation8 + $0x20] sm:$0xff]
    %v265 = vld [vmem:[#allocation8 + $0x28] sm:$0xff]
    %v266 = vld [vmem:[#allocation8 + $0x30] sm:$0xff]
    %v267 = vld [vmem:[#allocation8 + $0x38] sm:$0xff]
    %v268 = vld [vmem:[#allocation8 + $0x40] sm:$0xff]
    %v269 = vld [vmem:[#allocation8 + $0x48] sm:$0xff]
    %v270 = vld [vmem:[#allocation8 + $0x50] sm:$0xff]
    %v271 = vld [vmem:[#allocation8 + $0x58] sm:$0xff]
    %v272 = vld [vmem:[#allocation8 + $0x60] sm:$0xff]
    %v273 = vld [vmem:[#allocation8 + $0x68] sm:$0xff]
    %v274 = vld [vmem:[#allocation8 + $0x70] sm:$0xff]
    %v275 = vld [vmem:[#allocation8 + $0x78] sm:$0xff]
    %v276 = vld [vmem:[%s6] sm:$0x1]
    %v278 = vlaneseq
    %v279 = vshrl.u32 %v278, 7
    %v280 = vsub.s32 0, %v279
    %v281 = vrot.slane %v276, %v280
    %283 = vmatprep.subr.mxu0 0.0
    %284 = vmatpush1.msra.mxu0 %v260
    %285 = vmatprep.subr.mxu0 0.0
    %286 = vmatpush1.msra.mxu0 %v261
    %287 = vmatprep.subr.mxu0 0.0
    %288 = vmatpush1.msra.mxu0 %v262
    %289 = vmatprep.subr.mxu0 0.0
    %290 = vmatpush1.msra.mxu0 %v263
    %291 = vmatprep.subr.mxu0 0.0
    %292 = vmatpush1.msra.mxu0 %v264
    %293 = vmatprep.subr.mxu0 0.0
    %294 = vmatpush1.msra.mxu0 %v265
    %295 = vmatprep.subr.mxu0 0.0
    %296 = vmatpush1.msra.mxu0 %v266
    %297 = vmatprep.subr.mxu0 0.0
    %298 = vmatpush1.msra.mxu0 %v267
    %299 = vmatprep.subr.mxu0 0.0
    %300 = vmatpush1.msra.mxu0 %v268
    %301 = vmatprep.subr.mxu0 0.0
    %302 = vmatpush1.msra.mxu0 %v269
    %303 = vmatprep.subr.mxu0 0.0
    %304 = vmatpush1.msra.mxu0 %v270
    %305 = vmatprep.subr.mxu0 0.0
    %306 = vmatpush1.msra.mxu0 %v271
    %307 = vmatprep.subr.mxu0 0.0
    %308 = vmatpush1.msra.mxu0 %v272
    %309 = vmatprep.subr.mxu0 0.0
    %310 = vmatpush1.msra.mxu0 %v273
    %311 = vmatprep.subr.mxu0 0.0
    %312 = vmatpush1.msra.mxu0 %v274
    %313 = vmatprep.subr.mxu0 0.0
    %314 = vmatpush1.msra.mxu0 %v275
    %315 = vmatprep.subr.mxu0 0.0
    %316 = vmatpush1.msra.mxu0 0.0
    %317 = vmatprep.subr.mxu0 0.0
    %318 = vmatpush1.msra.mxu0 0.0
    %319 = vmatprep.subr.mxu0 0.0
    %320 = vmatpush1.msra.mxu0 0.0
    %321 = vmatprep.subr.mxu0 0.0
    %322 = vmatpush1.msra.mxu0 0.0
    %323 = vmatprep.subr.mxu0 0.0
    %324 = vmatpush1.msra.mxu0 0.0
    %325 = vmatprep.subr.mxu0 0.0
    %326 = vmatpush1.msra.mxu0 0.0
    %327 = vmatprep.subr.mxu0 0.0
    %328 = vmatpush1.msra.mxu0 0.0
    %329 = vmatprep.subr.mxu0 0.0
    %330 = vmatpush1.msra.mxu0 0.0
    %331 = vmatprep.subr.mxu0 0.0
    %332 = vmatpush1.msra.mxu0 0.0
    %333 = vmatprep.subr.mxu0 0.0
    %334 = vmatpush1.msra.mxu0 0.0
    %335 = vmatprep.subr.mxu0 0.0
    %336 = vmatpush1.msra.mxu0 0.0
    %337 = vmatprep.subr.mxu0 0.0
    %338 = vmatpush1.msra.mxu0 0.0
    %339 = vmatprep.subr.mxu0 0.0
    %340 = vmatpush1.msra.mxu0 0.0
    %341 = vmatprep.subr.mxu0 0.0
    %342 = vmatpush1.msra.mxu0 0.0
    %343 = vmatprep.subr.mxu0 0.0
    %344 = vmatpush1.msra.mxu0 0.0
    %345 = vmatprep.subr.mxu0 0.0
    %346 = vmatpush1.msra.mxu0 0.0
    %347 = vmatprep.mubr.f32.mxu0 0.0
    %348 = vmatmul.mubr.f32.gmra.mrb[0].mxu0 %v259
    %v349 = vpop.f32.mrb[0].mxu0
    %v350 = vadd.f32 %v281, %v349
    %v351 = vpop.f32.mrb[0].mxu0
    %352 = vdwg.mxu0
    %vm353 = vcmask 9216
    %354 = vst.msk [vmem:[#allocation10] sm:$0x3] %vm353, %v350
    // Predicated region
    $region46: #{tpu_custom_call.1} parent=1 // pred_check
      _
    $region47: #{tpu_custom_call.1} parent=1 // pred_check_branch
      %356 = sbr.rel (0) target = $region49
    $region48: #{tpu_custom_call.1} parent=1 // pred_region
      %s358 = ssub.s32 32, 32
      %359 = vsyncadd [#allocation4], %s358
      %s361 = sshll.u32 [#allocation10], 4
      %s362 = int_to_ptr.vmem [resolvable:$true] %s361
      %364 = dma.vmem_to_hbm [thread:$0]  %s362, 32, %s7, [#allocation4]
    $region49: #{tpu_custom_call.1} parent=1 // pred_fallthru
      _
    // Predicated region
    $region50: #{tpu_custom_call.1} parent=1 // pred_check
      _
    $region51: #{tpu_custom_call.1} parent=1 // pred_check_branch
      %366 = sbr.rel (0) target = $region53
    $region52: #{tpu_custom_call.1} parent=1 // pred_region
      %367 = dma.done [#allocation4], 32
    $region53: #{tpu_custom_call.1} parent=1 // pred_fallthru
      _
    %368 = vsyncpa [#allocation3], 1
    %369 = vsyncpa [#allocation6], 1
    %370 = vsyncpa [#allocation9], 1
    %371 = vsyncpa [#allocation4], 1

</llo_original>
